<compile_context>
chip_gen: v6e
topology: v6e:2x2x1
jax: 0.10.0
libtpu: 0.0.40
codegen_flags: <defaults>
</compile_context>

<pallas_src>
import functools

import jax
import jax.numpy as jnp
from jax.experimental import pallas as pl
from jax.experimental.pallas import tpu as pltpu

OUT_LANES = 128          # lane-dense output slab width (one full vreg lane extent)
_MIN_SPLIT_ROWS = 256    # only force a >=2-step grid (v7x megacore) when B >= 2*this


def ppo_kernel(x_ref, w1_ref, b1_ref, w2_ref, b2_ref, wh_ref, bh_ref,
               out_ref, *, n_actions):
    # fc1 + relu  (bf16 MXU inputs, f32 accumulation, f32 elementwise)
    x = x_ref[...].astype(jnp.bfloat16)
    h1 = jnp.dot(x, w1_ref[...], preferred_element_type=jnp.float32) + b1_ref[...]
    h1 = jnp.maximum(h1, 0.0)

    # fc2 + relu (hidden padded to 128 lanes -> lane-dense operands everywhere)
    h2 = jnp.dot(h1.astype(jnp.bfloat16), w2_ref[...],
                 preferred_element_type=jnp.float32) + b2_ref[...]
    h2 = jnp.maximum(h2, 0.0)

    # Fused heads: lanes [0, n_actions) = action logits, lane n_actions = value,
    # remaining lanes are exactly 0 (weights/biases zero-padded).
    head = jnp.dot(h2.astype(jnp.bfloat16), wh_ref[...],
                   preferred_element_type=jnp.float32) + bh_ref[...]

    lane = jax.lax.broadcasted_iota(jnp.int32, head.shape, 1)
    prob_mask = lane < n_actions

    # Stable softmax over the action lanes only. Masking the max guarantees
    # exp(0) = 1 on the max lane, so the denominator can never underflow to 0
    # even if every action logit is extremely negative.
    head_m = jnp.where(prob_mask, head, -1e30)
    m = jnp.max(head_m, axis=-1, keepdims=True)
    e = jnp.exp(head_m - m)                      # padding/value lanes underflow to 0
    denom = jnp.sum(e, axis=-1, keepdims=True)
    # NOTE: approx reciprocal (EUP slot) -> sum(probs) == 1 +/- few e-4; renormalize
    # downstream if a categorical sampler needs exact normalization.
    probs = e * pl.reciprocal(denom, approx=True)

    # Single lane-dense (block_b, 128) unmasked store, bf16 (halves HBM writeback).
    out_ref[...] = jnp.where(lane == n_actions, head, probs).astype(out_ref.dtype)


def init_params(key, n_states, n_actions, hidden_size):
    """Per-layer f32 params mirroring the PyTorch module (synthetic init)."""
    ks = jax.random.split(key, 8)

    def lin(kw, kb, fan_in, fan_out):
        bound = 1.0 / jnp.sqrt(fan_in)
        w = jax.random.uniform(kw, (fan_in, fan_out), jnp.float32, -bound, bound)
        b = jax.random.uniform(kb, (1, fan_out), jnp.float32, -bound, bound)
        return w, b

    w1, b1 = lin(ks[0], ks[1], n_states, hidden_size)
    w2, b2 = lin(ks[2], ks[3], hidden_size, hidden_size)
    wa, ba = lin(ks[4], ks[5], hidden_size, n_actions)
    wv, bv = lin(ks[6], ks[7], hidden_size, 1)
    return dict(w1=w1, b1=b1, w2=w2, b2=b2, wa=wa, ba=ba, wv=wv, bv=bv)


def pack_params(params):
    """Fuse action/value heads, zero-pad hidden and head lanes to 128, cast matmul
    weights to bf16 (biases stay f32). Zero padding is numerically exact."""
    n_states, hidden = params["w1"].shape
    n_actions = params["wa"].shape[1]
    assert n_actions + 1 <= OUT_LANES
    hp = -(-hidden // 128) * 128          # hidden padded to a multiple of 128 lanes

    def pad2(a, rows, cols):
        return jnp.pad(a, ((0, rows - a.shape[0]), (0, cols - a.shape[1])))

    w_head = jnp.concatenate([params["wa"], params["wv"]], axis=1)
    b_head = jnp.concatenate([params["ba"], params["bv"]], axis=1)

    return dict(
        w1=pad2(params["w1"], n_states, hp).astype(jnp.bfloat16),
        b1=pad2(params["b1"], 1, hp),
        w2=pad2(params["w2"], hp, hp).astype(jnp.bfloat16),
        b2=pad2(params["b2"], 1, hp),
        wh=pad2(w_head, hp, OUT_LANES).astype(jnp.bfloat16),
        bh=pad2(b_head, 1, OUT_LANES),
        n_actions=n_actions,
    )


def _pick_block_b(B, block_b):
    block_b = min(block_b, B)
    # v7x megacore: guarantee >= 2 grid steps once B is large enough to amortize the
    # extra per-step overhead, so the "parallel" batch axis can span both TensorCores.
    if B >= 2 * _MIN_SPLIT_ROWS:
        block_b = min(block_b, pl.cdiv(B, 2))
    if block_b < B:
        block_b = max(8, (block_b // 8) * 8)   # keep partial-batch blocks sublane-aligned
    return block_b


def ppo_forward_slab(x, packed, *, block_b=512):
    """x: (B, n_states) f32. Returns the (B, 128) bf16 output slab:
    lanes [0, n_actions) = action_probs, lane n_actions = state_value, rest = 0.
    Preferred interface: slice at the point of use (or fuse the consumer)."""
    B, n_states = x.shape
    n_actions = packed["n_actions"]
    block_b = _pick_block_b(B, block_b)
    grid_steps = pl.cdiv(B, block_b)

    consts = (packed["w1"], packed["b1"], packed["w2"], packed["b2"],
              packed["wh"], packed["bh"])

    # Grid-invariant weights/biases: constant block index -> stay resident; once the
    # grid has >1 step, single-buffer them (the default second buffer is pure waste).
    if grid_steps > 1:
        const_spec = lambda a: pl.BlockSpec(a.shape, lambda i: (0, 0),
                                            pipeline_mode=pl.Buffered(1))
    else:
        const_spec = lambda a: pl.BlockSpec(a.shape, lambda i: (0, 0))

    in_specs = [pl.BlockSpec((block_b, n_states), lambda i: (i, 0))] + \
               [const_spec(a) for a in consts]
    out_spec = pl.BlockSpec((block_b, OUT_LANES), lambda i: (i, 0))

    # Per-step VMEM estimate (double-buffered x/out blocks + ~5 f32 intermediates);
    # only raise the scoped limit if a very large tile would exceed v5e's 16 MiB default.
    est = 2 * (block_b * n_states * 4 + block_b * OUT_LANES * 2) \
        + 5 * block_b * OUT_LANES * 4
    cp = dict(dimension_semantics=("parallel",))
    if est > 12 * 1024 * 1024:
        cp["vmem_limit_bytes"] = min(est + (4 << 20), 48 << 20)

    return pl.pallas_call(
        functools.partial(ppo_kernel, n_actions=n_actions),
        grid=(grid_steps,),
        in_specs=in_specs,
        out_specs=out_spec,
        out_shape=jax.ShapeDtypeStruct((B, OUT_LANES), jnp.bfloat16),
        compiler_params=pltpu.CompilerParams(**cp),
    )(x, *consts)


def ppo_forward(x, packed, *, block_b=512):
    """Convenience wrapper matching the PyTorch module's (action_probs, state_value)
    return. Prefer ppo_forward_slab in hot paths (avoids two narrow output copies)."""
    slab = ppo_forward_slab(x, packed, block_b=block_b)
    n_actions = packed["n_actions"]
    return slab[:, :n_actions], slab[:, n_actions:n_actions + 1]


if __name__ == "__main__":
    key = jax.random.PRNGKey(0)
    k_x, k_p = jax.random.split(key)

    # Small, module-consistent shapes; batch 256 keeps the test cheap while letting us
    # exercise both the single-step and multi-step (pipelined, single-buffered weights)
    # grid configurations below.
    B, n_states, n_actions, hidden = 256, 16, 6, 64
    x = jax.random.normal(k_x, (B, n_states), jnp.float32)
    params = init_params(k_p, n_states, n_actions, hidden)
    packed = pack_params(params)

    # Pure-JAX reference with the same matmul numerics (bf16 inputs, f32 accumulation).
    def ref(x, p):
        bf = jnp.bfloat16
        mm = lambda a, w: jnp.dot(a.astype(bf), w.astype(bf),
                                  preferred_element_type=jnp.float32)
        h1 = jnp.maximum(mm(x, p["w1"]) + p["b1"], 0.0)
        h2 = jnp.maximum(mm(h1, p["w2"]) + p["b2"], 0.0)
        logits = mm(h2, p["wa"]) + p["ba"]
        return jax.nn.softmax(logits, axis=-1), mm(h2, p["wv"]) + p["bv"]

    rp, rv = ref(x, params)

    # block_b=512 -> grid (1,); block_b=64 -> grid (4,) (multi-step pipeline path).
    for bb in (512, 64):
        slab = ppo_forward_slab(x, packed, block_b=bb)
        jax.block_until_ready(slab)
        probs = slab[:, :n_actions].astype(jnp.float32)          # slice at point of use
        value = slab[:, n_actions:n_actions + 1].astype(jnp.float32)
        assert probs.shape == (B, n_actions) and value.shape == (B, 1)
        # bf16 output slab (~0.4% rel) + approx reciprocal (~1e-4) dominate the error.
        assert jnp.allclose(probs, rp, atol=1.5e-2), "action_probs mismatch"
        assert jnp.allclose(value, rv, atol=2e-2, rtol=2e-2), "state_value mismatch"
        assert jnp.allclose(jnp.sum(probs, axis=-1), 1.0, atol=3e-2), "probs not normalized"

    print("KERNEL_OK")
</pallas_src>

<mosaic_0001>
module attributes {stable_mosaic.version = 11 : i64} {
  func.func @ppo_kernel(%arg0: i32, %arg1: memref<256x16xf32, #tpu.memory_space<vmem>>, %arg2: memref<16x128xbf16, #tpu.memory_space<vmem>>, %arg3: memref<1x128xf32, #tpu.memory_space<vmem>>, %arg4: memref<128x128xbf16, #tpu.memory_space<vmem>>, %arg5: memref<1x128xf32, #tpu.memory_space<vmem>>, %arg6: memref<128x128xbf16, #tpu.memory_space<vmem>>, %arg7: memref<1x128xf32, #tpu.memory_space<vmem>>, %arg8: memref<256x128xbf16, #tpu.memory_space<vmem>>) attributes {dimension_semantics = [#tpu.dimension_semantics<parallel>], iteration_bounds = array<i64: 1>, scalar_prefetch = 0 : i64, scratch_operands = 0 : i64, tpu.core_type = #tpu.core_type<tc>, window_params = [{transform_indices = @transform_0, window_bounds = array<i64: 256, 16>}, {pipeline_mode = #tpu.pipeline_mode<synchronous>, transform_indices = @transform_1, window_bounds = array<i64: 16, 128>}, {pipeline_mode = #tpu.pipeline_mode<synchronous>, transform_indices = @transform_2, window_bounds = array<i64: 1, 128>}, {pipeline_mode = #tpu.pipeline_mode<synchronous>, transform_indices = @transform_3, window_bounds = array<i64: 128, 128>}, {pipeline_mode = #tpu.pipeline_mode<synchronous>, transform_indices = @transform_4, window_bounds = array<i64: 1, 128>}, {pipeline_mode = #tpu.pipeline_mode<synchronous>, transform_indices = @transform_5, window_bounds = array<i64: 128, 128>}, {pipeline_mode = #tpu.pipeline_mode<synchronous>, transform_indices = @transform_6, window_bounds = array<i64: 1, 128>}, {transform_indices = @transform_7, window_bounds = array<i64: 256, 128>}]} {
    %c0 = arith.constant 0 : index
    %c0_0 = arith.constant 0 : index
    %0 = vector.load %arg1[%c0, %c0_0] : memref<256x16xf32, #tpu.memory_space<vmem>>, vector<256x16xf32>
    %1 = arith.truncf %0 : vector<256x16xf32> to vector<256x16xbf16>
    %c0_1 = arith.constant 0 : index
    %c0_2 = arith.constant 0 : index
    %2 = vector.load %arg2[%c0_1, %c0_2] : memref<16x128xbf16, #tpu.memory_space<vmem>>, vector<16x128xbf16>
    %cst = arith.constant dense<0.000000e+00> : vector<256x128xf32>
    %3 = tpu.matmul %1, %2, %cst {dimension_numbers = #tpu.dot_dimension_numbers<[1], [0], [0], [1], [0, 0, 1, 1], [], []>} : vector<256x16xbf16>, vector<16x128xbf16>, vector<256x128xf32> -> vector<256x128xf32>
    %c0_3 = arith.constant 0 : index
    %c0_4 = arith.constant 0 : index
    %4 = vector.load %arg3[%c0_3, %c0_4] : memref<1x128xf32, #tpu.memory_space<vmem>>, vector<1x128xf32>
    %5 = vector.broadcast %4 : vector<1x128xf32> to vector<256x128xf32>
    %6 = arith.addf %3, %5 : vector<256x128xf32>
    %cst_5 = arith.constant 0.000000e+00 : f32
    %7 = vector.broadcast %cst_5 : f32 to vector<256x128xf32>
    %8 = arith.maximumf %6, %7 : vector<256x128xf32>
    %9 = arith.truncf %8 : vector<256x128xf32> to vector<256x128xbf16>
    %c0_6 = arith.constant 0 : index
    %c0_7 = arith.constant 0 : index
    %10 = vector.load %arg4[%c0_6, %c0_7] : memref<128x128xbf16, #tpu.memory_space<vmem>>, vector<128x128xbf16>
    %cst_8 = arith.constant dense<0.000000e+00> : vector<256x128xf32>
    %11 = tpu.matmul %9, %10, %cst_8 {dimension_numbers = #tpu.dot_dimension_numbers<[1], [0], [0], [1], [0, 0, 1, 1], [], []>} : vector<256x128xbf16>, vector<128x128xbf16>, vector<256x128xf32> -> vector<256x128xf32>
    %c0_9 = arith.constant 0 : index
    %c0_10 = arith.constant 0 : index
    %12 = vector.load %arg5[%c0_9, %c0_10] : memref<1x128xf32, #tpu.memory_space<vmem>>, vector<1x128xf32>
    %13 = vector.broadcast %12 : vector<1x128xf32> to vector<256x128xf32>
    %14 = arith.addf %11, %13 : vector<256x128xf32>
    %cst_11 = arith.constant 0.000000e+00 : f32
    %15 = vector.broadcast %cst_11 : f32 to vector<256x128xf32>
    %16 = arith.maximumf %14, %15 : vector<256x128xf32>
    %17 = arith.truncf %16 : vector<256x128xf32> to vector<256x128xbf16>
    %c0_12 = arith.constant 0 : index
    %c0_13 = arith.constant 0 : index
    %18 = vector.load %arg6[%c0_12, %c0_13] : memref<128x128xbf16, #tpu.memory_space<vmem>>, vector<128x128xbf16>
    %cst_14 = arith.constant dense<0.000000e+00> : vector<256x128xf32>
    %19 = tpu.matmul %17, %18, %cst_14 {dimension_numbers = #tpu.dot_dimension_numbers<[1], [0], [0], [1], [0, 0, 1, 1], [], []>} : vector<256x128xbf16>, vector<128x128xbf16>, vector<256x128xf32> -> vector<256x128xf32>
    %c0_15 = arith.constant 0 : index
    %c0_16 = arith.constant 0 : index
    %20 = vector.load %arg7[%c0_15, %c0_16] : memref<1x128xf32, #tpu.memory_space<vmem>>, vector<1x128xf32>
    %21 = vector.broadcast %20 : vector<1x128xf32> to vector<256x128xf32>
    %22 = arith.addf %19, %21 : vector<256x128xf32>
    %23 = tpu.iota {dimensions = array<i32: 1>} : vector<256x128xi32>
    %c6_i32 = arith.constant 6 : i32
    %24 = vector.broadcast %c6_i32 : i32 to vector<256x128xi32>
    %25 = arith.cmpi slt, %23, %24 : vector<256x128xi32>
    %cst_17 = arith.constant -1.000000e+30 : f32
    %26 = vector.broadcast %cst_17 : f32 to vector<256x128xf32>
    %27 = arith.select %25, %22, %26 : vector<256x128xi1>, vector<256x128xf32>
    %cst_18 = arith.constant dense<0xFF800000> : vector<256xf32>
    %28 = vector.multi_reduction <maximumf>, %27, %cst_18 [1] : vector<256x128xf32> to vector<256xf32>
    %29 = vector.shape_cast %28 : vector<256xf32> to vector<256x1xf32>
    %30 = vector.broadcast %29 : vector<256x1xf32> to vector<256x128xf32>
    %31 = arith.subf %27, %30 : vector<256x128xf32>
    %32 = math.exp %31 : vector<256x128xf32>
    %cst_19 = arith.constant dense<0.000000e+00> : vector<256xf32>
    %33 = vector.multi_reduction <add>, %32, %cst_19 [1] : vector<256x128xf32> to vector<256xf32>
    %34 = vector.shape_cast %33 : vector<256xf32> to vector<256x1xf32>
    %35 = tpu.reciprocal %34 {approx = true} : vector<256x1xf32> -> vector<256x1xf32>
    %36 = vector.broadcast %35 : vector<256x1xf32> to vector<256x128xf32>
    %37 = arith.mulf %32, %36 : vector<256x128xf32>
    %c6_i32_20 = arith.constant 6 : i32
    %38 = vector.broadcast %c6_i32_20 : i32 to vector<256x128xi32>
    %39 = arith.cmpi eq, %23, %38 : vector<256x128xi32>
    %40 = arith.select %39, %22, %37 : vector<256x128xi1>, vector<256x128xf32>
    %41 = arith.truncf %40 : vector<256x128xf32> to vector<256x128xbf16>
    %c0_21 = arith.constant 0 : index
    %c0_22 = arith.constant 0 : index
    %42 = vector.load %arg8[%c0_21, %c0_22] : memref<256x128xbf16, #tpu.memory_space<vmem>>, vector<256x128xbf16>
    tpu.vector_store %arg8[%c0_21, %c0_22], %41 {strides = array<i32>} : memref<256x128xbf16, #tpu.memory_space<vmem>>, vector<256x128xbf16>,
    return
  }
  func.func @transform_0(%arg0: i32) -> (i32, i32) {
    %c0_i32 = arith.constant 0 : i32
    %c0_i32_0 = arith.constant 0 : i32
    return %arg0, %c0_i32 : i32, i32
  }
  func.func @transform_1(%arg0: i32) -> (i32, i32) {
    %c0_i32 = arith.constant 0 : i32
    %c0_i32_0 = arith.constant 0 : i32
    %c0_i32_1 = arith.constant 0 : i32
    return %c0_i32, %c0_i32_0 : i32, i32
  }
  func.func @transform_2(%arg0: i32) -> (i32, i32) {
    %c0_i32 = arith.constant 0 : i32
    %c0_i32_0 = arith.constant 0 : i32
    %c0_i32_1 = arith.constant 0 : i32
    return %c0_i32, %c0_i32_0 : i32, i32
  }
  func.func @transform_3(%arg0: i32) -> (i32, i32) {
    %c0_i32 = arith.constant 0 : i32
    %c0_i32_0 = arith.constant 0 : i32
    %c0_i32_1 = arith.constant 0 : i32
    return %c0_i32, %c0_i32_0 : i32, i32
  }
  func.func @transform_4(%arg0: i32) -> (i32, i32) {
    %c0_i32 = arith.constant 0 : i32
    %c0_i32_0 = arith.constant 0 : i32
    %c0_i32_1 = arith.constant 0 : i32
    return %c0_i32, %c0_i32_0 : i32, i32
  }
  func.func @transform_5(%arg0: i32) -> (i32, i32) {
    %c0_i32 = arith.constant 0 : i32
    %c0_i32_0 = arith.constant 0 : i32
    %c0_i32_1 = arith.constant 0 : i32
    return %c0_i32, %c0_i32_0 : i32, i32
  }
  func.func @transform_6(%arg0: i32) -> (i32, i32) {
    %c0_i32 = arith.constant 0 : i32
    %c0_i32_0 = arith.constant 0 : i32
    %c0_i32_1 = arith.constant 0 : i32
    return %c0_i32, %c0_i32_0 : i32, i32
  }
  func.func @transform_7(%arg0: i32) -> (i32, i32) {
    %c0_i32 = arith.constant 0 : i32
    %c0_i32_0 = arith.constant 0 : i32
    return %arg0, %c0_i32 : i32, i32
  }
}

</mosaic_0001>

<llo_original>
// kernel: tpu_custom_call.1
$region0: #{tpu_custom_call.1}
  #allocation0 [shape = 'u32[]', space=smem, size = 0x4, offset = 0x4, fixed_abs, tag = 'smem constant byte address 0x4 - core index']
  #allocation1 [shape = 'u32[144,128]{1,0:T(1,128)}', space=vmem, size = 0x12000, scoped, tag = 'internal scratch']
  %s0 = inlined_call_operand.vmem [shape: f32[256,16], index: 0, kind: input, shape index: {}]
  %s1 = inlined_call_operand.vmem [shape: bf16[16,128], index: 1, kind: input, shape index: {}]
  %s2 = inlined_call_operand.vmem [shape: f32[1,128], index: 2, kind: input, shape index: {}]
  %s3 = inlined_call_operand.vmem [shape: bf16[128,128], index: 3, kind: input, shape index: {}]
  %s4 = inlined_call_operand.vmem [shape: f32[1,128], index: 4, kind: input, shape index: {}]
  %s5 = inlined_call_operand.vmem [shape: bf16[128,128], index: 5, kind: input, shape index: {}]
  %s6 = inlined_call_operand.vmem [shape: f32[1,128], index: 6, kind: input, shape index: {}]
  %s7 = inlined_call_operand.hbm [shape: bf16[256,128], index: 7, kind: output, shape index: {}]
  %s8 = sld [smem:[#allocation0]]
  $region38: #{tpu_custom_call.1} parent=0
    _
  %s10 = ssub.s32 1, %s8
  %s11 = scalar_select 0, %s10, %s8
  $region1: #{tpu_custom_call.1} parent=0
    #allocation2 [shape = 'u8[65536]{0}', space=vmem, size = 0x10000, scoped, tag = 'output window, operand 0, single buffered']
    #allocation3 [shape = 's32[1]{0}', space=sflag, size = 0x4, scoped, tag = 'scoped memory for tpu_custom_call.1']
    %12 = vsyncpa [#allocation3], 0
    // Predicated region
    $region2: #{tpu_custom_call.1} parent=1 // pred_check
      _
    $region3: #{tpu_custom_call.1} parent=1 // pred_check_branch
      %14 = sbr.rel (0) target = $region5
    $region4: #{tpu_custom_call.1} parent=1 // pred_region
      _
    $region5: #{tpu_custom_call.1} parent=1 // pred_fallthru
      _
    // Predicated region
    $region6: #{tpu_custom_call.1} parent=1 // pred_check
      _
    $region7: #{tpu_custom_call.1} parent=1 // pred_check_branch
      %16 = sbr.rel (0) target = $region9
    $region8: #{tpu_custom_call.1} parent=1 // pred_region
      _
    $region9: #{tpu_custom_call.1} parent=1 // pred_fallthru
      _
    // Predicated region
    $region10: #{tpu_custom_call.1} parent=1 // pred_check
      _
    $region11: #{tpu_custom_call.1} parent=1 // pred_check_branch
      %18 = sbr.rel (0) target = $region13
    $region12: #{tpu_custom_call.1} parent=1 // pred_region
      _
    $region13: #{tpu_custom_call.1} parent=1 // pred_fallthru
      _
    // Predicated region
    $region14: #{tpu_custom_call.1} parent=1 // pred_check
      _
    $region15: #{tpu_custom_call.1} parent=1 // pred_check_branch
      %20 = sbr.rel (0) target = $region17
    $region16: #{tpu_custom_call.1} parent=1 // pred_region
      _
    $region17: #{tpu_custom_call.1} parent=1 // pred_fallthru
      _
    // Predicated region
    $region18: #{tpu_custom_call.1} parent=1 // pred_check
      _
    $region19: #{tpu_custom_call.1} parent=1 // pred_check_branch
      %22 = sbr.rel (0) target = $region21
    $region20: #{tpu_custom_call.1} parent=1 // pred_region
      _
    $region21: #{tpu_custom_call.1} parent=1 // pred_fallthru
      _
    // Predicated region
    $region22: #{tpu_custom_call.1} parent=1 // pred_check
      _
    $region23: #{tpu_custom_call.1} parent=1 // pred_check_branch
      %24 = sbr.rel (0) target = $region25
    $region24: #{tpu_custom_call.1} parent=1 // pred_region
      _
    $region25: #{tpu_custom_call.1} parent=1 // pred_fallthru
      _
    // Predicated region
    $region26: #{tpu_custom_call.1} parent=1 // pred_check
      _
    $region27: #{tpu_custom_call.1} parent=1 // pred_check_branch
      %26 = sbr.rel (0) target = $region29
    $region28: #{tpu_custom_call.1} parent=1 // pred_region
      _
    $region29: #{tpu_custom_call.1} parent=1 // pred_fallthru
      _
    %v28 = vld [vmem:[%s0] sm:$0xff]
    %v29 = vld [vmem:[%s0 + $0x8] sm:$0xff]
    %v30 = vld [vmem:[%s0 + $0x10] sm:$0xff]
    %v31 = vld [vmem:[%s0 + $0x18] sm:$0xff]
    %v32 = vld [vmem:[%s0 + $0x20] sm:$0xff]
    %v33 = vld [vmem:[%s0 + $0x28] sm:$0xff]
    %v34 = vld [vmem:[%s0 + $0x30] sm:$0xff]
    %v35 = vld [vmem:[%s0 + $0x38] sm:$0xff]
    %v36 = vld [vmem:[%s0 + $0x40] sm:$0xff]
    %v37 = vld [vmem:[%s0 + $0x48] sm:$0xff]
    %v38 = vld [vmem:[%s0 + $0x50] sm:$0xff]
    %v39 = vld [vmem:[%s0 + $0x58] sm:$0xff]
    %v40 = vld [vmem:[%s0 + $0x60] sm:$0xff]
    %v41 = vld [vmem:[%s0 + $0x68] sm:$0xff]
    %v42 = vld [vmem:[%s0 + $0x70] sm:$0xff]
    %v43 = vld [vmem:[%s0 + $0x78] sm:$0xff]
    %v44 = vld [vmem:[%s0 + $0x80] sm:$0xff]
    %v45 = vld [vmem:[%s0 + $0x88] sm:$0xff]
    %v46 = vld [vmem:[%s0 + $0x90] sm:$0xff]
    %v47 = vld [vmem:[%s0 + $0x98] sm:$0xff]
    %v48 = vld [vmem:[%s0 + $0xa0] sm:$0xff]
    %v49 = vld [vmem:[%s0 + $0xa8] sm:$0xff]
    %v50 = vld [vmem:[%s0 + $0xb0] sm:$0xff]
    %v51 = vld [vmem:[%s0 + $0xb8] sm:$0xff]
    %v52 = vld [vmem:[%s0 + $0xc0] sm:$0xff]
    %v53 = vld [vmem:[%s0 + $0xc8] sm:$0xff]
    %v54 = vld [vmem:[%s0 + $0xd0] sm:$0xff]
    %v55 = vld [vmem:[%s0 + $0xd8] sm:$0xff]
    %v56 = vld [vmem:[%s0 + $0xe0] sm:$0xff]
    %v57 = vld [vmem:[%s0 + $0xe8] sm:$0xff]
    %v58 = vld [vmem:[%s0 + $0xf0] sm:$0xff]
    %v59 = vld [vmem:[%s0 + $0xf8] sm:$0xff]
    %v60 = vpack.c.bf16 %v29, %v28
    %v61 = vpack.c.bf16 %v31, %v30
    %v62 = vpack.c.bf16 %v33, %v32
    %v63 = vpack.c.bf16 %v35, %v34
    %v64 = vpack.c.bf16 %v37, %v36
    %v65 = vpack.c.bf16 %v39, %v38
    %v66 = vpack.c.bf16 %v41, %v40
    %v67 = vpack.c.bf16 %v43, %v42
    %v68 = vpack.c.bf16 %v45, %v44
    %v69 = vpack.c.bf16 %v47, %v46
    %v70 = vpack.c.bf16 %v49, %v48
    %v71 = vpack.c.bf16 %v51, %v50
    %v72 = vpack.c.bf16 %v53, %v52
    %v73 = vpack.c.bf16 %v55, %v54
    %v74 = vpack.c.bf16 %v57, %v56
    %v75 = vpack.c.bf16 %v59, %v58
    %v76 = vld [vmem:[%s1] sm:$0xf]
    %v77 = vld [vmem:[%s1 + $0x4] sm:$0xf]
    %v78 = vld [vmem:[%s2] sm:$0x1]
    %v80 = vlaneseq
    %v81 = vshrl.u32 %v80, 7
    %v82 = vsub.s32 0, %v81
    %v83 = vrot.slane %v78, %v82
    %v87 = vunpack.c.l.b16 %v76
    %v88 = vunpack.c.l.b16 %v77
    %v89 = vpack.c.b16 %v88, %v87
    %vm91 = vcmask 130048
    %v93 = vsel %vm91, %v60, 0
    %v96 = vsel %vm91, %v61, 0
    %v99 = vsel %vm91, %v62, 0
    %v102 = vsel %vm91, %v63, 0
    %v105 = vsel %vm91, %v64, 0
    %v108 = vsel %vm91, %v65, 0
    %v111 = vsel %vm91, %v66, 0
    %v114 = vsel %vm91, %v67, 0
    %v117 = vsel %vm91, %v68, 0
    %v120 = vsel %vm91, %v69, 0
    %v123 = vsel %vm91, %v70, 0
    %v126 = vsel %vm91, %v71, 0
    %v129 = vsel %vm91, %v72, 0
    %v132 = vsel %vm91, %v73, 0
    %v135 = vsel %vm91, %v74, 0
    %v138 = vsel %vm91, %v75, 0
    %140 = vmatprep.subr.bf16.mxu0 0
    %141 = vmatpush1.bf16.msra.mxu0 0
    %142 = vmatprep.subr.bf16.mxu0 0
    %143 = vmatpush1.bf16.msra.mxu0 0
    %144 = vmatprep.subr.bf16.mxu0 0
    %145 = vmatpush1.bf16.msra.mxu0 0
    %146 = vmatprep.subr.bf16.mxu0 0
    %147 = vmatpush1.bf16.msra.mxu0 0
    %148 = vmatprep.subr.bf16.mxu0 0
    %149 = vmatpush1.bf16.msra.mxu0 0
    %150 = vmatprep.subr.bf16.mxu0 0
    %151 = vmatpush1.bf16.msra.mxu0 0
    %152 = vmatprep.subr.bf16.mxu0 0
    %153 = vmatpush1.bf16.msra.mxu0 0
    %154 = vmatprep.subr.bf16.mxu0 0
    %155 = vmatpush1.bf16.msra.mxu0 %v89
    %156 = vmatprep.subr.bf16.mxu0 0
    %157 = vmatpush2.bf16.msra.mxu0 0
    %158 = vmatprep.subr.bf16.mxu0 0
    %159 = vmatpush2.bf16.msra.mxu0 0
    %160 = vmatprep.subr.bf16.mxu0 0
    %161 = vmatpush2.bf16.msra.mxu0 0
    %162 = vmatprep.subr.bf16.mxu0 0
    %163 = vmatpush2.bf16.msra.mxu0 0
    %164 = vmatprep.subr.bf16.mxu0 0
    %165 = vmatpush2.bf16.msra.mxu0 0
    %166 = vmatprep.subr.bf16.mxu0 0
    %167 = vmatpush2.bf16.msra.mxu0 0
    %168 = vmatprep.subr.bf16.mxu0 0
    %169 = vmatpush2.bf16.msra.mxu0 0
    %170 = vmatprep.subr.bf16.mxu0 0
    %171 = vmatpush2.bf16.msra.mxu0 0
    %172 = vmatprep.mubr.bf16.mxu0 0
    %173 = vmatmul.mubr.bf16.gmra.mxu0 %v93
    %v174 = vpop.f32.mrf.mxu0
    %v175 = vadd.f32 %v83, %v174
    %v176 = vpop.f32.mrf.mxu0
    %v177 = vpop.f32.mrf.mxu0
    %v178 = vadd.f32 %v83, %v177
    %v179 = vpop.f32.mrf.mxu0
    %180 = vmatprep.mubr.bf16.mxu0 0
    %181 = vmatmul.mubr.bf16.gmra.mxu0 %v96
    %v182 = vpop.f32.mrf.mxu0
    %v183 = vadd.f32 %v83, %v182
    %v184 = vpop.f32.mrf.mxu0
    %v185 = vpop.f32.mrf.mxu0
    %v186 = vadd.f32 %v83, %v185
    %v187 = vpop.f32.mrf.mxu0
    %188 = vmatprep.mubr.bf16.mxu0 0
    %189 = vmatmul.mubr.bf16.gmra.mxu0 %v99
    %v190 = vpop.f32.mrf.mxu0
    %v191 = vadd.f32 %v83, %v190
    %v192 = vpop.f32.mrf.mxu0
    %v193 = vpop.f32.mrf.mxu0
    %v194 = vadd.f32 %v83, %v193
    %v195 = vpop.f32.mrf.mxu0
    %196 = vmatprep.mubr.bf16.mxu0 0
    %197 = vmatmul.mubr.bf16.gmra.mxu0 %v102
    %v198 = vpop.f32.mrf.mxu0
    %v199 = vadd.f32 %v83, %v198
    %v200 = vpop.f32.mrf.mxu0
    %v201 = vpop.f32.mrf.mxu0
    %v202 = vadd.f32 %v83, %v201
    %v203 = vpop.f32.mrf.mxu0
    %204 = vmatprep.mubr.bf16.mxu0 0
    %205 = vmatmul.mubr.bf16.gmra.mxu0 %v105
    %v206 = vpop.f32.mrf.mxu0
    %v207 = vadd.f32 %v83, %v206
    %v208 = vpop.f32.mrf.mxu0
    %v209 = vpop.f32.mrf.mxu0
    %v210 = vadd.f32 %v83, %v209
    %v211 = vpop.f32.mrf.mxu0
    %212 = vmatprep.mubr.bf16.mxu0 0
    %213 = vmatmul.mubr.bf16.gmra.mxu0 %v108
    %v214 = vpop.f32.mrf.mxu0
    %v215 = vadd.f32 %v83, %v214
    %v216 = vpop.f32.mrf.mxu0
    %v217 = vpop.f32.mrf.mxu0
    %v218 = vadd.f32 %v83, %v217
    %v219 = vpop.f32.mrf.mxu0
    %220 = vmatprep.mubr.bf16.mxu0 0
    %221 = vmatmul.mubr.bf16.gmra.mxu0 %v111
    %v222 = vpop.f32.mrf.mxu0
    %v223 = vadd.f32 %v83, %v222
    %v224 = vpop.f32.mrf.mxu0
    %v225 = vpop.f32.mrf.mxu0
    %v226 = vadd.f32 %v83, %v225
    %v227 = vpop.f32.mrf.mxu0
    %228 = vmatprep.mubr.bf16.mxu0 0
    %229 = vmatmul.mubr.bf16.gmra.mxu0 %v114
    %v230 = vpop.f32.mrf.mxu0
    %v231 = vadd.f32 %v83, %v230
    %v232 = vpop.f32.mrf.mxu0
    %v233 = vpop.f32.mrf.mxu0
    %v234 = vadd.f32 %v83, %v233
    %v235 = vpop.f32.mrf.mxu0
    %236 = vmatprep.mubr.bf16.mxu0 0
    %237 = vmatmul.mubr.bf16.gmra.mxu0 %v117
    %v238 = vpop.f32.mrf.mxu0
    %v239 = vadd.f32 %v83, %v238
    %v240 = vpop.f32.mrf.mxu0
    %v241 = vpop.f32.mrf.mxu0
    %v242 = vadd.f32 %v83, %v241
    %v243 = vpop.f32.mrf.mxu0
    %244 = vmatprep.mubr.bf16.mxu0 0
    %245 = vmatmul.mubr.bf16.gmra.mxu0 %v120
    %v246 = vpop.f32.mrf.mxu0
    %v247 = vadd.f32 %v83, %v246
    %v248 = vpop.f32.mrf.mxu0
    %v249 = vpop.f32.mrf.mxu0
    %v250 = vadd.f32 %v83, %v249
    %v251 = vpop.f32.mrf.mxu0
    %252 = vmatprep.mubr.bf16.mxu0 0
    %253 = vmatmul.mubr.bf16.gmra.mxu0 %v123
    %v254 = vpop.f32.mrf.mxu0
    %v255 = vadd.f32 %v83, %v254
    %v256 = vpop.f32.mrf.mxu0
    %v257 = vpop.f32.mrf.mxu0
    %v258 = vadd.f32 %v83, %v257
    %v259 = vpop.f32.mrf.mxu0
    %260 = vmatprep.mubr.bf16.mxu0 0
    %261 = vmatmul.mubr.bf16.gmra.mxu0 %v126
    %v262 = vpop.f32.mrf.mxu0
    %v263 = vadd.f32 %v83, %v262
    %v264 = vpop.f32.mrf.mxu0
    %v265 = vpop.f32.mrf.mxu0
    %v266 = vadd.f32 %v83, %v265
    %v267 = vpop.f32.mrf.mxu0
    %268 = vmatprep.mubr.bf16.mxu0 0
    %269 = vmatmul.mubr.bf16.gmra.mxu0 %v129
    %v270 = vpop.f32.mrf.mxu0
    %v271 = vadd.f32 %v83, %v270
    %v272 = vpop.f32.mrf.mxu0
    %v273 = vpop.f32.mrf.mxu0
    %v274 = vadd.f32 %v83, %v273
    %v275 = vpop.f32.mrf.mxu0
    %276 = vmatprep.mubr.bf16.mxu0 0
    %277 = vmatmul.mubr.bf16.gmra.mxu0 %v132
    %v278 = vpop.f32.mrf.mxu0
    %v279 = vadd.f32 %v83, %v278
    %v280 = vpop.f32.mrf.mxu0
    %v281 = vpop.f32.mrf.mxu0
    %v282 = vadd.f32 %v83, %v281
    %v283 = vpop.f32.mrf.mxu0
    %284 = vmatprep.mubr.bf16.mxu0 0
    %285 = vmatmul.mubr.bf16.gmra.mxu0 %v135
    %v286 = vpop.f32.mrf.mxu0
    %v287 = vadd.f32 %v83, %v286
    %v288 = vpop.f32.mrf.mxu0
    %v289 = vpop.f32.mrf.mxu0
    %v290 = vadd.f32 %v83, %v289
    %v291 = vpop.f32.mrf.mxu0
    %292 = vmatprep.mubr.bf16.mxu0 0
    %293 = vmatmul.mubr.bf16.gmra.mxu0 %v138
    %v294 = vpop.f32.mrf.mxu0
    %v295 = vadd.f32 %v83, %v294
    %v296 = vpop.f32.mrf.mxu0
    %v297 = vpop.f32.mrf.mxu0
    %v298 = vadd.f32 %v83, %v297
    %v299 = vpop.f32.mrf.mxu0
    %300 = vdwg.mxu0
    %v301 = vmax.f32 %v175, 0.0
    %v302 = vmax.f32 %v178, 0.0
    %v303 = vmax.f32 %v183, 0.0
    %v304 = vmax.f32 %v186, 0.0
    %v305 = vmax.f32 %v191, 0.0
    %v306 = vmax.f32 %v194, 0.0
    %v307 = vmax.f32 %v199, 0.0
    %v308 = vmax.f32 %v202, 0.0
    %v309 = vmax.f32 %v207, 0.0
    %v310 = vmax.f32 %v210, 0.0
    %v311 = vmax.f32 %v215, 0.0
    %v312 = vmax.f32 %v218, 0.0
    %v313 = vmax.f32 %v223, 0.0
    %v314 = vmax.f32 %v226, 0.0
    %v315 = vmax.f32 %v231, 0.0
    %v316 = vmax.f32 %v234, 0.0
    %v317 = vmax.f32 %v239, 0.0
    %v318 = vmax.f32 %v242, 0.0
    %v319 = vmax.f32 %v247, 0.0
    %v320 = vmax.f32 %v250, 0.0
    %v321 = vmax.f32 %v255, 0.0
    %v322 = vmax.f32 %v258, 0.0
    %v323 = vmax.f32 %v263, 0.0
    %v324 = vmax.f32 %v266, 0.0
    %v325 = vmax.f32 %v271, 0.0
    %v326 = vmax.f32 %v274, 0.0
    %v327 = vmax.f32 %v279, 0.0
    %v328 = vmax.f32 %v282, 0.0
    %v329 = vmax.f32 %v287, 0.0
    %v330 = vmax.f32 %v290, 0.0
    %v331 = vmax.f32 %v295, 0.0
    %v332 = vmax.f32 %v298, 0.0
    %v333 = vpack.c.bf16 %v302, %v301
    %v334 = vpack.c.bf16 %v304, %v303
    %v335 = vpack.c.bf16 %v306, %v305
    %v336 = vpack.c.bf16 %v308, %v307
    %v337 = vpack.c.bf16 %v310, %v309
    %v338 = vpack.c.bf16 %v312, %v311
    %v339 = vpack.c.bf16 %v314, %v313
    %v340 = vpack.c.bf16 %v316, %v315
    %v341 = vpack.c.bf16 %v318, %v317
    %v342 = vpack.c.bf16 %v320, %v319
    %v343 = vpack.c.bf16 %v322, %v321
    %v344 = vpack.c.bf16 %v324, %v323
    %v345 = vpack.c.bf16 %v326, %v325
    %v346 = vpack.c.bf16 %v328, %v327
    %v347 = vpack.c.bf16 %v330, %v329
    %v348 = vpack.c.bf16 %v332, %v331
    %v349 = vld [vmem:[%s3] sm:$0xf]
    %v350 = vld [vmem:[%s3 + $0x4] sm:$0xf]
    %v351 = vld [vmem:[%s3 + $0x8] sm:$0xf]
    %v352 = vld [vmem:[%s3 + $0xc] sm:$0xf]
    %v353 = vld [vmem:[%s3 + $0x10] sm:$0xf]
    %v354 = vld [vmem:[%s3 + $0x14] sm:$0xf]
    %v355 = vld [vmem:[%s3 + $0x18] sm:$0xf]
    %v356 = vld [vmem:[%s3 + $0x1c] sm:$0xf]
    %v357 = vld [vmem:[%s3 + $0x20] sm:$0xf]
    %v358 = vld [vmem:[%s3 + $0x24] sm:$0xf]
    %v359 = vld [vmem:[%s3 + $0x28] sm:$0xf]
    %v360 = vld [vmem:[%s3 + $0x2c] sm:$0xf]
    %v361 = vld [vmem:[%s3 + $0x30] sm:$0xf]
    %v362 = vld [vmem:[%s3 + $0x34] sm:$0xf]
    %v363 = vld [vmem:[%s3 + $0x38] sm:$0xf]
    %v364 = vld [vmem:[%s3 + $0x3c] sm:$0xf]
    %v365 = vld [vmem:[%s4] sm:$0x1]
    %v367 = vlaneseq
    %v368 = vshrl.u32 %v367, 7
    %v369 = vsub.s32 0, %v368
    %v370 = vrot.slane %v365, %v369
    %v388 = vunpack.c.l.b16 %v349
    %v389 = vunpack.c.l.b16 %v350
    %v390 = vunpack.c.l.b16 %v351
    %v391 = vunpack.c.l.b16 %v352
    %v392 = vunpack.c.l.b16 %v353
    %v393 = vunpack.c.l.b16 %v354
    %v394 = vunpack.c.l.b16 %v355
    %v395 = vunpack.c.l.b16 %v356
    %v396 = vunpack.c.l.b16 %v357
    %v397 = vunpack.c.l.b16 %v358
    %v398 = vunpack.c.l.b16 %v359
    %v399 = vunpack.c.l.b16 %v360
    %v400 = vunpack.c.l.b16 %v361
    %v401 = vunpack.c.l.b16 %v362
    %v402 = vunpack.c.l.b16 %v363
    %v403 = vunpack.c.l.b16 %v364
    %v404 = vpack.c.b16 %v389, %v388
    %v405 = vpack.c.b16 %v391, %v390
    %v406 = vpack.c.b16 %v393, %v392
    %v407 = vpack.c.b16 %v395, %v394
    %v408 = vpack.c.b16 %v397, %v396
    %v409 = vpack.c.b16 %v399, %v398
    %v410 = vpack.c.b16 %v401, %v400
    %v411 = vpack.c.b16 %v403, %v402
    %420 = vmatprep.subr.bf16.mxu0 0
    %421 = vmatpush1.bf16.msra.mxu0 %v411
    %422 = vmatprep.subr.bf16.mxu0 0
    %423 = vmatpush1.bf16.msra.mxu0 %v410
    %424 = vmatprep.subr.bf16.mxu0 0
    %425 = vmatpush1.bf16.msra.mxu0 %v409
    %426 = vmatprep.subr.bf16.mxu0 0
    %427 = vmatpush1.bf16.msra.mxu0 %v408
    %428 = vmatprep.subr.bf16.mxu0 0
    %429 = vmatpush1.bf16.msra.mxu0 %v407
    %430 = vmatprep.subr.bf16.mxu0 0
    %431 = vmatpush1.bf16.msra.mxu0 %v406
    %432 = vmatprep.subr.bf16.mxu0 0
    %433 = vmatpush1.bf16.msra.mxu0 %v405
    %434 = vmatprep.subr.bf16.mxu0 0
    %435 = vmatpush1.bf16.msra.mxu0 %v404
    %436 = vmatprep.subr.bf16.mxu0 0
    %437 = vmatpush2.bf16.msra.mxu0 0
    %438 = vmatprep.subr.bf16.mxu0 0
    %439 = vmatpush2.bf16.msra.mxu0 0
    %440 = vmatprep.subr.bf16.mxu0 0
    %441 = vmatpush2.bf16.msra.mxu0 0
    %442 = vmatprep.subr.bf16.mxu0 0
    %443 = vmatpush2.bf16.msra.mxu0 0
    %444 = vmatprep.subr.bf16.mxu0 0
    %445 = vmatpush2.bf16.msra.mxu0 0
    %446 = vmatprep.subr.bf16.mxu0 0
    %447 = vmatpush2.bf16.msra.mxu0 0
    %448 = vmatprep.subr.bf16.mxu0 0
    %449 = vmatpush2.bf16.msra.mxu0 0
    %450 = vmatprep.subr.bf16.mxu0 0
    %451 = vmatpush2.bf16.msra.mxu0 0
    %452 = vmatprep.mubr.bf16.mxu0 0
    %453 = vmatmul.mubr.bf16.gmra.mxu0 %v333
    %v454 = vpop.f32.mrf.mxu0
    %v455 = vadd.f32 %v370, %v454
    %v456 = vpop.f32.mrf.mxu0
    %v457 = vpop.f32.mrf.mxu0
    %v458 = vadd.f32 %v370, %v457
    %v459 = vpop.f32.mrf.mxu0
    %460 = vmatprep.mubr.bf16.mxu0 0
    %461 = vmatmul.mubr.bf16.gmra.mxu0 %v334
    %v462 = vpop.f32.mrf.mxu0
    %v463 = vadd.f32 %v370, %v462
    %v464 = vpop.f32.mrf.mxu0
    %v465 = vpop.f32.mrf.mxu0
    %v466 = vadd.f32 %v370, %v465
    %v467 = vpop.f32.mrf.mxu0
    %468 = vmatprep.mubr.bf16.mxu0 0
    %469 = vmatmul.mubr.bf16.gmra.mxu0 %v335
    %v470 = vpop.f32.mrf.mxu0
    %v471 = vadd.f32 %v370, %v470
    %v472 = vpop.f32.mrf.mxu0
    %v473 = vpop.f32.mrf.mxu0
    %v474 = vadd.f32 %v370, %v473
    %v475 = vpop.f32.mrf.mxu0
    %476 = vmatprep.mubr.bf16.mxu0 0
    %477 = vmatmul.mubr.bf16.gmra.mxu0 %v336
    %v478 = vpop.f32.mrf.mxu0
    %v479 = vadd.f32 %v370, %v478
    %v480 = vpop.f32.mrf.mxu0
    %v481 = vpop.f32.mrf.mxu0
    %v482 = vadd.f32 %v370, %v481
    %v483 = vpop.f32.mrf.mxu0
    %484 = vmatprep.mubr.bf16.mxu0 0
    %485 = vmatmul.mubr.bf16.gmra.mxu0 %v337
    %v486 = vpop.f32.mrf.mxu0
    %v487 = vadd.f32 %v370, %v486
    %v488 = vpop.f32.mrf.mxu0
    %v489 = vpop.f32.mrf.mxu0
    %v490 = vadd.f32 %v370, %v489
    %v491 = vpop.f32.mrf.mxu0
    %492 = vmatprep.mubr.bf16.mxu0 0
    %493 = vmatmul.mubr.bf16.gmra.mxu0 %v338
    %v494 = vpop.f32.mrf.mxu0
    %v495 = vadd.f32 %v370, %v494
    %v496 = vpop.f32.mrf.mxu0
    %v497 = vpop.f32.mrf.mxu0
    %v498 = vadd.f32 %v370, %v497
    %v499 = vpop.f32.mrf.mxu0
    %500 = vmatprep.mubr.bf16.mxu0 0
    %501 = vmatmul.mubr.bf16.gmra.mxu0 %v339
    %v502 = vpop.f32.mrf.mxu0
    %v503 = vadd.f32 %v370, %v502
    %v504 = vpop.f32.mrf.mxu0
    %v505 = vpop.f32.mrf.mxu0
    %v506 = vadd.f32 %v370, %v505
    %v507 = vpop.f32.mrf.mxu0
    %508 = vmatprep.mubr.bf16.mxu0 0
    %509 = vmatmul.mubr.bf16.gmra.mxu0 %v340
    %v510 = vpop.f32.mrf.mxu0
    %v511 = vadd.f32 %v370, %v510
    %v512 = vpop.f32.mrf.mxu0
    %v513 = vpop.f32.mrf.mxu0
    %v514 = vadd.f32 %v370, %v513
    %v515 = vpop.f32.mrf.mxu0
    %516 = vmatprep.mubr.bf16.mxu0 0
    %517 = vmatmul.mubr.bf16.gmra.mxu0 %v341
    %v518 = vpop.f32.mrf.mxu0
    %v519 = vadd.f32 %v370, %v518
    %v520 = vpop.f32.mrf.mxu0
    %v521 = vpop.f32.mrf.mxu0
    %v522 = vadd.f32 %v370, %v521
    %v523 = vpop.f32.mrf.mxu0
    %524 = vmatprep.mubr.bf16.mxu0 0
    %525 = vmatmul.mubr.bf16.gmra.mxu0 %v342
    %v526 = vpop.f32.mrf.mxu0
    %v527 = vadd.f32 %v370, %v526
    %v528 = vpop.f32.mrf.mxu0
    %v529 = vpop.f32.mrf.mxu0
    %v530 = vadd.f32 %v370, %v529
    %v531 = vpop.f32.mrf.mxu0
    %532 = vmatprep.mubr.bf16.mxu0 0
    %533 = vmatmul.mubr.bf16.gmra.mxu0 %v343
    %v534 = vpop.f32.mrf.mxu0
    %v535 = vadd.f32 %v370, %v534
    %v536 = vpop.f32.mrf.mxu0
    %v537 = vpop.f32.mrf.mxu0
    %v538 = vadd.f32 %v370, %v537
    %v539 = vpop.f32.mrf.mxu0
    %540 = vmatprep.mubr.bf16.mxu0 0
    %541 = vmatmul.mubr.bf16.gmra.mxu0 %v344
    %v542 = vpop.f32.mrf.mxu0
    %v543 = vadd.f32 %v370, %v542
    %v544 = vpop.f32.mrf.mxu0
    %v545 = vpop.f32.mrf.mxu0
    %v546 = vadd.f32 %v370, %v545
    %v547 = vpop.f32.mrf.mxu0
    %548 = vmatprep.mubr.bf16.mxu0 0
    %549 = vmatmul.mubr.bf16.gmra.mxu0 %v345
    %v550 = vpop.f32.mrf.mxu0
    %v551 = vadd.f32 %v370, %v550
    %v552 = vpop.f32.mrf.mxu0
    %v553 = vpop.f32.mrf.mxu0
    %v554 = vadd.f32 %v370, %v553
    %v555 = vpop.f32.mrf.mxu0
    %556 = vmatprep.mubr.bf16.mxu0 0
    %557 = vmatmul.mubr.bf16.gmra.mxu0 %v346
    %v558 = vpop.f32.mrf.mxu0
    %v559 = vadd.f32 %v370, %v558
    %v560 = vpop.f32.mrf.mxu0
    %v561 = vpop.f32.mrf.mxu0
    %v562 = vadd.f32 %v370, %v561
    %v563 = vpop.f32.mrf.mxu0
    %564 = vmatprep.mubr.bf16.mxu0 0
    %565 = vmatmul.mubr.bf16.gmra.mxu0 %v347
    %v566 = vpop.f32.mrf.mxu0
    %v567 = vadd.f32 %v370, %v566
    %v568 = vpop.f32.mrf.mxu0
    %v569 = vpop.f32.mrf.mxu0
    %v570 = vadd.f32 %v370, %v569
    %v571 = vpop.f32.mrf.mxu0
    %572 = vmatprep.mubr.bf16.mxu0 0
    %573 = vmatmul.mubr.bf16.gmra.mxu0 %v348
    %v574 = vpop.f32.mrf.mxu0
    %v575 = vadd.f32 %v370, %v574
    %v576 = vpop.f32.mrf.mxu0
    %v577 = vpop.f32.mrf.mxu0
    %v578 = vadd.f32 %v370, %v577
    %v579 = vpop.f32.mrf.mxu0
    %580 = vdwg.mxu0
    %v581 = vmax.f32 %v455, 0.0
    %v582 = vmax.f32 %v458, 0.0
    %v583 = vmax.f32 %v463, 0.0
    %v584 = vmax.f32 %v466, 0.0
    %v585 = vmax.f32 %v471, 0.0
    %v586 = vmax.f32 %v474, 0.0
    %v587 = vmax.f32 %v479, 0.0
    %v588 = vmax.f32 %v482, 0.0
    %v589 = vmax.f32 %v487, 0.0
    %v590 = vmax.f32 %v490, 0.0
    %v591 = vmax.f32 %v495, 0.0
    %v592 = vmax.f32 %v498, 0.0
    %v593 = vmax.f32 %v503, 0.0
    %v594 = vmax.f32 %v506, 0.0
    %v595 = vmax.f32 %v511, 0.0
    %v596 = vmax.f32 %v514, 0.0
    %v597 = vmax.f32 %v519, 0.0
    %v598 = vmax.f32 %v522, 0.0
    %v599 = vmax.f32 %v527, 0.0
    %v600 = vmax.f32 %v530, 0.0
    %v601 = vmax.f32 %v535, 0.0
    %v602 = vmax.f32 %v538, 0.0
    %v603 = vmax.f32 %v543, 0.0
    %v604 = vmax.f32 %v546, 0.0
    %v605 = vmax.f32 %v551, 0.0
    %v606 = vmax.f32 %v554, 0.0
    %v607 = vmax.f32 %v559, 0.0
    %v608 = vmax.f32 %v562, 0.0
    %v609 = vmax.f32 %v567, 0.0
    %v610 = vmax.f32 %v570, 0.0
    %v611 = vmax.f32 %v575, 0.0
    %v612 = vmax.f32 %v578, 0.0
    %v613 = vpack.c.bf16 %v582, %v581
    %v614 = vpack.c.bf16 %v584, %v583
    %v615 = vpack.c.bf16 %v586, %v585
    %v616 = vpack.c.bf16 %v588, %v587
    %v617 = vpack.c.bf16 %v590, %v589
    %v618 = vpack.c.bf16 %v592, %v591
    %v619 = vpack.c.bf16 %v594, %v593
    %v620 = vpack.c.bf16 %v596, %v595
    %v621 = vpack.c.bf16 %v598, %v597
    %v622 = vpack.c.bf16 %v600, %v599
    %v623 = vpack.c.bf16 %v602, %v601
    %v624 = vpack.c.bf16 %v604, %v603
    %v625 = vpack.c.bf16 %v606, %v605
    %v626 = vpack.c.bf16 %v608, %v607
    %v627 = vpack.c.bf16 %v610, %v609
    %v628 = vpack.c.bf16 %v612, %v611
    %v629 = vld [vmem:[%s5] sm:$0xf]
    %v630 = vld [vmem:[%s5 + $0x4] sm:$0xf]
    %v631 = vld [vmem:[%s5 + $0x8] sm:$0xf]
    %v632 = vld [vmem:[%s5 + $0xc] sm:$0xf]
    %v633 = vld [vmem:[%s5 + $0x10] sm:$0xf]
    %v634 = vld [vmem:[%s5 + $0x14] sm:$0xf]
    %v635 = vld [vmem:[%s5 + $0x18] sm:$0xf]
    %v636 = vld [vmem:[%s5 + $0x1c] sm:$0xf]
    %v637 = vld [vmem:[%s5 + $0x20] sm:$0xf]
    %v638 = vld [vmem:[%s5 + $0x24] sm:$0xf]
    %v639 = vld [vmem:[%s5 + $0x28] sm:$0xf]
    %v640 = vld [vmem:[%s5 + $0x2c] sm:$0xf]
    %v641 = vld [vmem:[%s5 + $0x30] sm:$0xf]
    %v642 = vld [vmem:[%s5 + $0x34] sm:$0xf]
    %v643 = vld [vmem:[%s5 + $0x38] sm:$0xf]
    %v644 = vld [vmem:[%s5 + $0x3c] sm:$0xf]
    %v645 = vld [vmem:[%s6] sm:$0x1]
    %v647 = vlaneseq
    %v648 = vshrl.u32 %v647, 7
    %v649 = vsub.s32 0, %v648
    %v650 = vrot.slane %v645, %v649
    %v668 = vunpack.c.l.b16 %v629
    %v669 = vunpack.c.l.b16 %v630
    %v670 = vunpack.c.l.b16 %v631
    %v671 = vunpack.c.l.b16 %v632
    %v672 = vunpack.c.l.b16 %v633
    %v673 = vunpack.c.l.b16 %v634
    %v674 = vunpack.c.l.b16 %v635
    %v675 = vunpack.c.l.b16 %v636
    %v676 = vunpack.c.l.b16 %v637
    %v677 = vunpack.c.l.b16 %v638
    %v678 = vunpack.c.l.b16 %v639
    %v679 = vunpack.c.l.b16 %v640
    %v680 = vunpack.c.l.b16 %v641
    %v681 = vunpack.c.l.b16 %v642
    %v682 = vunpack.c.l.b16 %v643
    %v683 = vunpack.c.l.b16 %v644
    %v684 = vpack.c.b16 %v669, %v668
    %v685 = vpack.c.b16 %v671, %v670
    %v686 = vpack.c.b16 %v673, %v672
    %v687 = vpack.c.b16 %v675, %v674
    %v688 = vpack.c.b16 %v677, %v676
    %v689 = vpack.c.b16 %v679, %v678
    %v690 = vpack.c.b16 %v681, %v680
    %v691 = vpack.c.b16 %v683, %v682
    %700 = vmatprep.subr.bf16.mxu0 0
    %701 = vmatpush1.bf16.msra.mxu0 %v691
    %702 = vmatprep.subr.bf16.mxu0 0
    %703 = vmatpush1.bf16.msra.mxu0 %v690
    %704 = vmatprep.subr.bf16.mxu0 0
    %705 = vmatpush1.bf16.msra.mxu0 %v689
    %706 = vmatprep.subr.bf16.mxu0 0
    %707 = vmatpush1.bf16.msra.mxu0 %v688
    %708 = vmatprep.subr.bf16.mxu0 0
    %709 = vmatpush1.bf16.msra.mxu0 %v687
    %710 = vmatprep.subr.bf16.mxu0 0
    %711 = vmatpush1.bf16.msra.mxu0 %v686
    %712 = vmatprep.subr.bf16.mxu0 0
    %713 = vmatpush1.bf16.msra.mxu0 %v685
    %714 = vmatprep.subr.bf16.mxu0 0
    %715 = vmatpush1.bf16.msra.mxu0 %v684
    %716 = vmatprep.subr.bf16.mxu0 0
    %717 = vmatpush2.bf16.msra.mxu0 0
    %718 = vmatprep.subr.bf16.mxu0 0
    %719 = vmatpush2.bf16.msra.mxu0 0
    %720 = vmatprep.subr.bf16.mxu0 0
    %721 = vmatpush2.bf16.msra.mxu0 0
    %722 = vmatprep.subr.bf16.mxu0 0
    %723 = vmatpush2.bf16.msra.mxu0 0
    %724 = vmatprep.subr.bf16.mxu0 0
    %725 = vmatpush2.bf16.msra.mxu0 0
    %726 = vmatprep.subr.bf16.mxu0 0
    %727 = vmatpush2.bf16.msra.mxu0 0
    %728 = vmatprep.subr.bf16.mxu0 0
    %729 = vmatpush2.bf16.msra.mxu0 0
    %730 = vmatprep.subr.bf16.mxu0 0
    %731 = vmatpush2.bf16.msra.mxu0 0
    %732 = vmatprep.mubr.bf16.mxu0 0
    %733 = vmatmul.mubr.bf16.gmra.mxu0 %v613
    %v734 = vpop.f32.mrf.mxu0
    %v735 = vadd.f32 %v650, %v734
    %v736 = vpop.f32.mrf.mxu0
    %v737 = vpop.f32.mrf.mxu0
    %v738 = vadd.f32 %v650, %v737
    %v739 = vpop.f32.mrf.mxu0
    %740 = vmatprep.mubr.bf16.mxu0 0
    %741 = vmatmul.mubr.bf16.gmra.mxu0 %v614
    %v742 = vpop.f32.mrf.mxu0
    %v743 = vadd.f32 %v650, %v742
    %v744 = vpop.f32.mrf.mxu0
    %v745 = vpop.f32.mrf.mxu0
    %v746 = vadd.f32 %v650, %v745
    %v747 = vpop.f32.mrf.mxu0
    %748 = vmatprep.mubr.bf16.mxu0 0
    %749 = vmatmul.mubr.bf16.gmra.mxu0 %v615
    %v750 = vpop.f32.mrf.mxu0
    %v751 = vadd.f32 %v650, %v750
    %v752 = vpop.f32.mrf.mxu0
    %v753 = vpop.f32.mrf.mxu0
    %v754 = vadd.f32 %v650, %v753
    %v755 = vpop.f32.mrf.mxu0
    %756 = vmatprep.mubr.bf16.mxu0 0
    %757 = vmatmul.mubr.bf16.gmra.mxu0 %v616
    %v758 = vpop.f32.mrf.mxu0
    %v759 = vadd.f32 %v650, %v758
    %v760 = vpop.f32.mrf.mxu0
    %v761 = vpop.f32.mrf.mxu0
    %v762 = vadd.f32 %v650, %v761
    %v763 = vpop.f32.mrf.mxu0
    %764 = vmatprep.mubr.bf16.mxu0 0
    %765 = vmatmul.mubr.bf16.gmra.mxu0 %v617
    %v766 = vpop.f32.mrf.mxu0
    %v767 = vadd.f32 %v650, %v766
    %v768 = vpop.f32.mrf.mxu0
    %v769 = vpop.f32.mrf.mxu0
    %v770 = vadd.f32 %v650, %v769
    %v771 = vpop.f32.mrf.mxu0
    %772 = vmatprep.mubr.bf16.mxu0 0
    %773 = vmatmul.mubr.bf16.gmra.mxu0 %v618
    %v774 = vpop.f32.mrf.mxu0
    %v775 = vadd.f32 %v650, %v774
    %v776 = vpop.f32.mrf.mxu0
    %v777 = vpop.f32.mrf.mxu0
    %v778 = vadd.f32 %v650, %v777
    %v779 = vpop.f32.mrf.mxu0
    %780 = vmatprep.mubr.bf16.mxu0 0
    %781 = vmatmul.mubr.bf16.gmra.mxu0 %v619
    %v782 = vpop.f32.mrf.mxu0
    %v783 = vadd.f32 %v650, %v782
    %v784 = vpop.f32.mrf.mxu0
    %v785 = vpop.f32.mrf.mxu0
    %v786 = vadd.f32 %v650, %v785
    %v787 = vpop.f32.mrf.mxu0
    %788 = vmatprep.mubr.bf16.mxu0 0
    %789 = vmatmul.mubr.bf16.gmra.mxu0 %v620
    %v790 = vpop.f32.mrf.mxu0
    %v791 = vadd.f32 %v650, %v790
    %v792 = vpop.f32.mrf.mxu0
    %v793 = vpop.f32.mrf.mxu0
    %v794 = vadd.f32 %v650, %v793
    %v795 = vpop.f32.mrf.mxu0
    %796 = vmatprep.mubr.bf16.mxu0 0
    %797 = vmatmul.mubr.bf16.gmra.mxu0 %v621
    %v798 = vpop.f32.mrf.mxu0
    %v799 = vadd.f32 %v650, %v798
    %v800 = vpop.f32.mrf.mxu0
    %v801 = vpop.f32.mrf.mxu0
    %v802 = vadd.f32 %v650, %v801
    %v803 = vpop.f32.mrf.mxu0
    %804 = vmatprep.mubr.bf16.mxu0 0
    %805 = vmatmul.mubr.bf16.gmra.mxu0 %v622
    %v806 = vpop.f32.mrf.mxu0
    %v807 = vadd.f32 %v650, %v806
    %v808 = vpop.f32.mrf.mxu0
    %v809 = vpop.f32.mrf.mxu0
    %v810 = vadd.f32 %v650, %v809
    %v811 = vpop.f32.mrf.mxu0
    %812 = vmatprep.mubr.bf16.mxu0 0
    %813 = vmatmul.mubr.bf16.gmra.mxu0 %v623
    %v814 = vpop.f32.mrf.mxu0
    %v815 = vadd.f32 %v650, %v814
    %v816 = vpop.f32.mrf.mxu0
    %v817 = vpop.f32.mrf.mxu0
    %v818 = vadd.f32 %v650, %v817
    %v819 = vpop.f32.mrf.mxu0
    %820 = vmatprep.mubr.bf16.mxu0 0
    %821 = vmatmul.mubr.bf16.gmra.mxu0 %v624
    %v822 = vpop.f32.mrf.mxu0
    %v823 = vadd.f32 %v650, %v822
    %v824 = vpop.f32.mrf.mxu0
    %v825 = vpop.f32.mrf.mxu0
    %v826 = vadd.f32 %v650, %v825
    %v827 = vpop.f32.mrf.mxu0
    %828 = vmatprep.mubr.bf16.mxu0 0
    %829 = vmatmul.mubr.bf16.gmra.mxu0 %v625
    %v830 = vpop.f32.mrf.mxu0
    %v831 = vadd.f32 %v650, %v830
    %v832 = vpop.f32.mrf.mxu0
    %v833 = vpop.f32.mrf.mxu0
    %v834 = vadd.f32 %v650, %v833
    %v835 = vpop.f32.mrf.mxu0
    %836 = vmatprep.mubr.bf16.mxu0 0
    %837 = vmatmul.mubr.bf16.gmra.mxu0 %v626
    %v838 = vpop.f32.mrf.mxu0
    %v839 = vadd.f32 %v650, %v838
    %v840 = vpop.f32.mrf.mxu0
    %v841 = vpop.f32.mrf.mxu0
    %v842 = vadd.f32 %v650, %v841
    %v843 = vpop.f32.mrf.mxu0
    %844 = vmatprep.mubr.bf16.mxu0 0
    %845 = vmatmul.mubr.bf16.gmra.mxu0 %v627
    %v846 = vpop.f32.mrf.mxu0
    %v847 = vadd.f32 %v650, %v846
    %v848 = vpop.f32.mrf.mxu0
    %v849 = vpop.f32.mrf.mxu0
    %v850 = vadd.f32 %v650, %v849
    %v851 = vpop.f32.mrf.mxu0
    %852 = vmatprep.mubr.bf16.mxu0 0
    %853 = vmatmul.mubr.bf16.gmra.mxu0 %v628
    %v854 = vpop.f32.mrf.mxu0
    %v855 = vadd.f32 %v650, %v854
    %v856 = vpop.f32.mrf.mxu0
    %v857 = vpop.f32.mrf.mxu0
    %v858 = vadd.f32 %v650, %v857
    %v859 = vpop.f32.mrf.mxu0
    %860 = vdwg.mxu0
    %v861 = vlaneseq
    %v862 = vand.u32 %v861, 127
    %vm863 = vcmp.lt.s32.totalorder %v862, 6
    %v864 = vsel %vm863, %v735, -1e+30
    %v865 = vsel %vm863, %v738, -1e+30
    %v866 = vsel %vm863, %v743, -1e+30
    %v867 = vsel %vm863, %v746, -1e+30
    %v868 = vsel %vm863, %v751, -1e+30
    %v869 = vsel %vm863, %v754, -1e+30
    %v870 = vsel %vm863, %v759, -1e+30
    %v871 = vsel %vm863, %v762, -1e+30
    %v872 = vsel %vm863, %v767, -1e+30
    %v873 = vsel %vm863, %v770, -1e+30
    %v874 = vsel %vm863, %v775, -1e+30
    %v875 = vsel %vm863, %v778, -1e+30
    %v876 = vsel %vm863, %v783, -1e+30
    %v877 = vsel %vm863, %v786, -1e+30
    %v878 = vsel %vm863, %v791, -1e+30
    %v879 = vsel %vm863, %v794, -1e+30
    %v880 = vsel %vm863, %v799, -1e+30
    %v881 = vsel %vm863, %v802, -1e+30
    %v882 = vsel %vm863, %v807, -1e+30
    %v883 = vsel %vm863, %v810, -1e+30
    %v884 = vsel %vm863, %v815, -1e+30
    %v885 = vsel %vm863, %v818, -1e+30
    %v886 = vsel %vm863, %v823, -1e+30
    %v887 = vsel %vm863, %v826, -1e+30
    %v888 = vsel %vm863, %v831, -1e+30
    %v889 = vsel %vm863, %v834, -1e+30
    %v890 = vsel %vm863, %v839, -1e+30
    %v891 = vsel %vm863, %v842, -1e+30
    %v892 = vsel %vm863, %v847, -1e+30
    %v893 = vsel %vm863, %v850, -1e+30
    %v894 = vsel %vm863, %v855, -1e+30
    %v895 = vsel %vm863, %v858, -1e+30
    %896 = vmax.xlane.f32.xlu0 %v864
    %v897 = vpop.xlane.xlu0 %896
    %898 = vmax.xlane.f32.xlu0 %v865
    %v899 = vpop.xlane.xlu0 %898
    %900 = vmax.xlane.f32.xlu0 %v866
    %v901 = vpop.xlane.xlu0 %900
    %902 = vmax.xlane.f32.xlu0 %v867
    %v903 = vpop.xlane.xlu0 %902
    %904 = vmax.xlane.f32.xlu0 %v868
    %v905 = vpop.xlane.xlu0 %904
    %906 = vmax.xlane.f32.xlu0 %v869
    %v907 = vpop.xlane.xlu0 %906
    %908 = vmax.xlane.f32.xlu0 %v870
    %v909 = vpop.xlane.xlu0 %908
    %910 = vmax.xlane.f32.xlu0 %v871
    %v911 = vpop.xlane.xlu0 %910
    %912 = vmax.xlane.f32.xlu0 %v872
    %v913 = vpop.xlane.xlu0 %912
    %914 = vmax.xlane.f32.xlu0 %v873
    %v915 = vpop.xlane.xlu0 %914
    %916 = vmax.xlane.f32.xlu0 %v874
    %v917 = vpop.xlane.xlu0 %916
    %918 = vmax.xlane.f32.xlu0 %v875
    %v919 = vpop.xlane.xlu0 %918
    %920 = vmax.xlane.f32.xlu0 %v876
    %v921 = vpop.xlane.xlu0 %920
    %922 = vmax.xlane.f32.xlu0 %v877
    %v923 = vpop.xlane.xlu0 %922
    %924 = vmax.xlane.f32.xlu0 %v878
    %v925 = vpop.xlane.xlu0 %924
    %926 = vmax.xlane.f32.xlu0 %v879
    %v927 = vpop.xlane.xlu0 %926
    %928 = vmax.xlane.f32.xlu0 %v880
    %v929 = vpop.xlane.xlu0 %928
    %930 = vmax.xlane.f32.xlu0 %v881
    %v931 = vpop.xlane.xlu0 %930
    %932 = vmax.xlane.f32.xlu0 %v882
    %v933 = vpop.xlane.xlu0 %932
    %934 = vmax.xlane.f32.xlu0 %v883
    %v935 = vpop.xlane.xlu0 %934
    %936 = vmax.xlane.f32.xlu0 %v884
    %v937 = vpop.xlane.xlu0 %936
    %938 = vmax.xlane.f32.xlu0 %v885
    %v939 = vpop.xlane.xlu0 %938
    %940 = vmax.xlane.f32.xlu0 %v886
    %v941 = vpop.xlane.xlu0 %940
    %942 = vmax.xlane.f32.xlu0 %v887
    %v943 = vpop.xlane.xlu0 %942
    %944 = vmax.xlane.f32.xlu0 %v888
    %v945 = vpop.xlane.xlu0 %944
    %946 = vmax.xlane.f32.xlu0 %v889
    %v947 = vpop.xlane.xlu0 %946
    %948 = vmax.xlane.f32.xlu0 %v890
    %v949 = vpop.xlane.xlu0 %948
    %950 = vmax.xlane.f32.xlu0 %v891
    %v951 = vpop.xlane.xlu0 %950
    %952 = vmax.xlane.f32.xlu0 %v892
    %v953 = vpop.xlane.xlu0 %952
    %954 = vmax.xlane.f32.xlu0 %v893
    %v955 = vpop.xlane.xlu0 %954
    %956 = vmax.xlane.f32.xlu0 %v894
    %v957 = vpop.xlane.xlu0 %956
    %958 = vmax.xlane.f32.xlu0 %v895
    %v959 = vpop.xlane.xlu0 %958
    %v960 = vsub.f32 %v864, %v897
    %v961 = vsub.f32 %v865, %v899
    %v962 = vsub.f32 %v866, %v901
    %v963 = vsub.f32 %v867, %v903
    %v964 = vsub.f32 %v868, %v905
    %v965 = vsub.f32 %v869, %v907
    %v966 = vsub.f32 %v870, %v909
    %v967 = vsub.f32 %v871, %v911
    %v968 = vsub.f32 %v872, %v913
    %v969 = vsub.f32 %v873, %v915
    %v970 = vsub.f32 %v874, %v917
    %v971 = vsub.f32 %v875, %v919
    %v972 = vsub.f32 %v876, %v921
    %v973 = vsub.f32 %v877, %v923
    %v974 = vsub.f32 %v878, %v925
    %v975 = vsub.f32 %v879, %v927
    %v976 = vsub.f32 %v880, %v929
    %v977 = vsub.f32 %v881, %v931
    %v978 = vsub.f32 %v882, %v933
    %v979 = vsub.f32 %v883, %v935
    %v980 = vsub.f32 %v884, %v937
    %v981 = vsub.f32 %v885, %v939
    %v982 = vsub.f32 %v886, %v941
    %v983 = vsub.f32 %v887, %v943
    %v984 = vsub.f32 %v888, %v945
    %v985 = vsub.f32 %v889, %v947
    %v986 = vsub.f32 %v890, %v949
    %v987 = vsub.f32 %v891, %v951
    %v988 = vsub.f32 %v892, %v953
    %v989 = vsub.f32 %v893, %v955
    %v990 = vsub.f32 %v894, %v957
    %v991 = vsub.f32 %v895, %v959
    %v992 = vmul.f32 %v960, 1.442695
    %v993 = vpow.pop %v992
    %v994 = vmul.f32 %v961, 1.442695
    %v995 = vpow.pop %v994
    %v996 = vmul.f32 %v962, 1.442695
    %v997 = vpow.pop %v996
    %v998 = vmul.f32 %v963, 1.442695
    %v999 = vpow.pop %v998
    %v1000 = vmul.f32 %v964, 1.442695
    %v1001 = vpow.pop %v1000
    %v1002 = vmul.f32 %v965, 1.442695
    %v1003 = vpow.pop %v1002
    %v1004 = vmul.f32 %v966, 1.442695
    %v1005 = vpow.pop %v1004
    %v1006 = vmul.f32 %v967, 1.442695
    %v1007 = vpow.pop %v1006
    %v1008 = vmul.f32 %v968, 1.442695
    %v1009 = vpow.pop %v1008
    %v1010 = vmul.f32 %v969, 1.442695
    %v1011 = vpow.pop %v1010
    %v1012 = vmul.f32 %v970, 1.442695
    %v1013 = vpow.pop %v1012
    %v1014 = vmul.f32 %v971, 1.442695
    %v1015 = vpow.pop %v1014
    %v1016 = vmul.f32 %v972, 1.442695
    %v1017 = vpow.pop %v1016
    %v1018 = vmul.f32 %v973, 1.442695
    %v1019 = vpow.pop %v1018
    %v1020 = vmul.f32 %v974, 1.442695
    %v1021 = vpow.pop %v1020
    %v1022 = vmul.f32 %v975, 1.442695
    %v1023 = vpow.pop %v1022
    %v1024 = vmul.f32 %v976, 1.442695
    %v1025 = vpow.pop %v1024
    %v1026 = vmul.f32 %v977, 1.442695
    %v1027 = vpow.pop %v1026
    %v1028 = vmul.f32 %v978, 1.442695
    %v1029 = vpow.pop %v1028
    %v1030 = vmul.f32 %v979, 1.442695
    %v1031 = vpow.pop %v1030
    %v1032 = vmul.f32 %v980, 1.442695
    %v1033 = vpow.pop %v1032
    %v1034 = vmul.f32 %v981, 1.442695
    %v1035 = vpow.pop %v1034
    %v1036 = vmul.f32 %v982, 1.442695
    %v1037 = vpow.pop %v1036
    %v1038 = vmul.f32 %v983, 1.442695
    %v1039 = vpow.pop %v1038
    %v1040 = vmul.f32 %v984, 1.442695
    %v1041 = vpow.pop %v1040
    %v1042 = vmul.f32 %v985, 1.442695
    %v1043 = vpow.pop %v1042
    %v1044 = vmul.f32 %v986, 1.442695
    %v1045 = vpow.pop %v1044
    %v1046 = vmul.f32 %v987, 1.442695
    %v1047 = vpow.pop %v1046
    %v1048 = vmul.f32 %v988, 1.442695
    %v1049 = vpow.pop %v1048
    %v1050 = vmul.f32 %v989, 1.442695
    %v1051 = vpow.pop %v1050
    %v1052 = vmul.f32 %v990, 1.442695
    %v1053 = vpow.pop %v1052
    %v1054 = vmul.f32 %v991, 1.442695
    %v1055 = vpow.pop %v1054
    %1056 = vadd.xlane.f32.xlu0 %v993
    %v1057 = vpop.xlane.xlu0 %1056
    %1058 = vadd.xlane.f32.xlu0 %v995
    %v1059 = vpop.xlane.xlu0 %1058
    %1060 = vadd.xlane.f32.xlu0 %v997
    %v1061 = vpop.xlane.xlu0 %1060
    %1062 = vadd.xlane.f32.xlu0 %v999
    %v1063 = vpop.xlane.xlu0 %1062
    %1064 = vadd.xlane.f32.xlu0 %v1001
    %v1065 = vpop.xlane.xlu0 %1064
    %1066 = vadd.xlane.f32.xlu0 %v1003
    %v1067 = vpop.xlane.xlu0 %1066
    %1068 = vadd.xlane.f32.xlu0 %v1005
    %v1069 = vpop.xlane.xlu0 %1068
    %1070 = vadd.xlane.f32.xlu0 %v1007
    %v1071 = vpop.xlane.xlu0 %1070
    %1072 = vadd.xlane.f32.xlu0 %v1009
    %v1073 = vpop.xlane.xlu0 %1072
    %1074 = vadd.xlane.f32.xlu0 %v1011
    %v1075 = vpop.xlane.xlu0 %1074
    %1076 = vadd.xlane.f32.xlu0 %v1013
    %v1077 = vpop.xlane.xlu0 %1076
    %1078 = vadd.xlane.f32.xlu0 %v1015
    %v1079 = vpop.xlane.xlu0 %1078
    %1080 = vadd.xlane.f32.xlu0 %v1017
    %v1081 = vpop.xlane.xlu0 %1080
    %1082 = vadd.xlane.f32.xlu0 %v1019
    %v1083 = vpop.xlane.xlu0 %1082
    %1084 = vadd.xlane.f32.xlu0 %v1021
    %v1085 = vpop.xlane.xlu0 %1084
    %1086 = vadd.xlane.f32.xlu0 %v1023
    %v1087 = vpop.xlane.xlu0 %1086
    %1088 = vadd.xlane.f32.xlu0 %v1025
    %v1089 = vpop.xlane.xlu0 %1088
    %1090 = vadd.xlane.f32.xlu0 %v1027
    %v1091 = vpop.xlane.xlu0 %1090
    %1092 = vadd.xlane.f32.xlu0 %v1029
    %v1093 = vpop.xlane.xlu0 %1092
    %1094 = vadd.xlane.f32.xlu0 %v1031
    %v1095 = vpop.xlane.xlu0 %1094
    %1096 = vadd.xlane.f32.xlu0 %v1033
    %v1097 = vpop.xlane.xlu0 %1096
    %1098 = vadd.xlane.f32.xlu0 %v1035
    %v1099 = vpop.xlane.xlu0 %1098
    %1100 = vadd.xlane.f32.xlu0 %v1037
    %v1101 = vpop.xlane.xlu0 %1100
    %1102 = vadd.xlane.f32.xlu0 %v1039
    %v1103 = vpop.xlane.xlu0 %1102
    %1104 = vadd.xlane.f32.xlu0 %v1041
    %v1105 = vpop.xlane.xlu0 %1104
    %1106 = vadd.xlane.f32.xlu0 %v1043
    %v1107 = vpop.xlane.xlu0 %1106
    %1108 = vadd.xlane.f32.xlu0 %v1045
    %v1109 = vpop.xlane.xlu0 %1108
    %1110 = vadd.xlane.f32.xlu0 %v1047
    %v1111 = vpop.xlane.xlu0 %1110
    %1112 = vadd.xlane.f32.xlu0 %v1049
    %v1113 = vpop.xlane.xlu0 %1112
    %1114 = vadd.xlane.f32.xlu0 %v1051
    %v1115 = vpop.xlane.xlu0 %1114
    %1116 = vadd.xlane.f32.xlu0 %v1053
    %v1117 = vpop.xlane.xlu0 %1116
    %1118 = vadd.xlane.f32.xlu0 %v1055
    %v1119 = vpop.xlane.xlu0 %1118
    %v1120 = vrcp.pop %v1057
    %v1121 = vrcp.pop %v1059
    %v1122 = vrcp.pop %v1061
    %v1123 = vrcp.pop %v1063
    %v1124 = vrcp.pop %v1065
    %v1125 = vrcp.pop %v1067
    %v1126 = vrcp.pop %v1069
    %v1127 = vrcp.pop %v1071
    %v1128 = vrcp.pop %v1073
    %v1129 = vrcp.pop %v1075
    %v1130 = vrcp.pop %v1077
    %v1131 = vrcp.pop %v1079
    %v1132 = vrcp.pop %v1081
    %v1133 = vrcp.pop %v1083
    %v1134 = vrcp.pop %v1085
    %v1135 = vrcp.pop %v1087
    %v1136 = vrcp.pop %v1089
    %v1137 = vrcp.pop %v1091
    %v1138 = vrcp.pop %v1093
    %v1139 = vrcp.pop %v1095
    %v1140 = vrcp.pop %v1097
    %v1141 = vrcp.pop %v1099
    %v1142 = vrcp.pop %v1101
    %v1143 = vrcp.pop %v1103
    %v1144 = vrcp.pop %v1105
    %v1145 = vrcp.pop %v1107
    %v1146 = vrcp.pop %v1109
    %v1147 = vrcp.pop %v1111
    %v1148 = vrcp.pop %v1113
    %v1149 = vrcp.pop %v1115
    %v1150 = vrcp.pop %v1117
    %v1151 = vrcp.pop %v1119
    %v1152 = vmul.f32 %v993, %v1120
    %v1153 = vmul.f32 %v995, %v1121
    %v1154 = vmul.f32 %v997, %v1122
    %v1155 = vmul.f32 %v999, %v1123
    %v1156 = vmul.f32 %v1001, %v1124
    %v1157 = vmul.f32 %v1003, %v1125
    %v1158 = vmul.f32 %v1005, %v1126
    %v1159 = vmul.f32 %v1007, %v1127
    %v1160 = vmul.f32 %v1009, %v1128
    %v1161 = vmul.f32 %v1011, %v1129
    %v1162 = vmul.f32 %v1013, %v1130
    %v1163 = vmul.f32 %v1015, %v1131
    %v1164 = vmul.f32 %v1017, %v1132
    %v1165 = vmul.f32 %v1019, %v1133
    %v1166 = vmul.f32 %v1021, %v1134
    %v1167 = vmul.f32 %v1023, %v1135
    %v1168 = vmul.f32 %v1025, %v1136
    %v1169 = vmul.f32 %v1027, %v1137
    %v1170 = vmul.f32 %v1029, %v1138
    %v1171 = vmul.f32 %v1031, %v1139
    %v1172 = vmul.f32 %v1033, %v1140
    %v1173 = vmul.f32 %v1035, %v1141
    %v1174 = vmul.f32 %v1037, %v1142
    %v1175 = vmul.f32 %v1039, %v1143
    %v1176 = vmul.f32 %v1041, %v1144
    %v1177 = vmul.f32 %v1043, %v1145
    %v1178 = vmul.f32 %v1045, %v1146
    %v1179 = vmul.f32 %v1047, %v1147
    %v1180 = vmul.f32 %v1049, %v1148
    %v1181 = vmul.f32 %v1051, %v1149
    %v1182 = vmul.f32 %v1053, %v1150
    %v1183 = vmul.f32 %v1055, %v1151
    %vm1184 = vcmp.eq.s32.totalorder %v862, 6
    %v1185 = vsel %vm1184, %v735, %v1152
    %v1186 = vsel %vm1184, %v738, %v1153
    %v1187 = vsel %vm1184, %v743, %v1154
    %v1188 = vsel %vm1184, %v746, %v1155
    %v1189 = vsel %vm1184, %v751, %v1156
    %v1190 = vsel %vm1184, %v754, %v1157
    %v1191 = vsel %vm1184, %v759, %v1158
    %v1192 = vsel %vm1184, %v762, %v1159
    %v1193 = vsel %vm1184, %v767, %v1160
    %v1194 = vsel %vm1184, %v770, %v1161
    %v1195 = vsel %vm1184, %v775, %v1162
    %v1196 = vsel %vm1184, %v778, %v1163
    %v1197 = vsel %vm1184, %v783, %v1164
    %v1198 = vsel %vm1184, %v786, %v1165
    %v1199 = vsel %vm1184, %v791, %v1166
    %v1200 = vsel %vm1184, %v794, %v1167
    %v1201 = vsel %vm1184, %v799, %v1168
    %v1202 = vsel %vm1184, %v802, %v1169
    %v1203 = vsel %vm1184, %v807, %v1170
    %v1204 = vsel %vm1184, %v810, %v1171
    %v1205 = vsel %vm1184, %v815, %v1172
    %v1206 = vsel %vm1184, %v818, %v1173
    %v1207 = vsel %vm1184, %v823, %v1174
    %v1208 = vsel %vm1184, %v826, %v1175
    %v1209 = vsel %vm1184, %v831, %v1176
    %v1210 = vsel %vm1184, %v834, %v1177
    %v1211 = vsel %vm1184, %v839, %v1178
    %v1212 = vsel %vm1184, %v842, %v1179
    %v1213 = vsel %vm1184, %v847, %v1180
    %v1214 = vsel %vm1184, %v850, %v1181
    %v1215 = vsel %vm1184, %v855, %v1182
    %v1216 = vsel %vm1184, %v858, %v1183
    %v1217 = vpack.c.bf16 %v1186, %v1185
    %v1218 = vpack.c.bf16 %v1188, %v1187
    %v1219 = vpack.c.bf16 %v1190, %v1189
    %v1220 = vpack.c.bf16 %v1192, %v1191
    %v1221 = vpack.c.bf16 %v1194, %v1193
    %v1222 = vpack.c.bf16 %v1196, %v1195
    %v1223 = vpack.c.bf16 %v1198, %v1197
    %v1224 = vpack.c.bf16 %v1200, %v1199
    %v1225 = vpack.c.bf16 %v1202, %v1201
    %v1226 = vpack.c.bf16 %v1204, %v1203
    %v1227 = vpack.c.bf16 %v1206, %v1205
    %v1228 = vpack.c.bf16 %v1208, %v1207
    %v1229 = vpack.c.bf16 %v1210, %v1209
    %v1230 = vpack.c.bf16 %v1212, %v1211
    %v1231 = vpack.c.bf16 %v1214, %v1213
    %v1232 = vpack.c.bf16 %v1216, %v1215
    %v1249 = vunpack.c.l.b16 %v1217
    %v1250 = vunpack.c.h.b16 %v1217
    %v1251 = vunpack.c.l.b16 %v1218
    %v1252 = vunpack.c.h.b16 %v1218
    %v1253 = vunpack.c.l.b16 %v1219
    %v1254 = vunpack.c.h.b16 %v1219
    %v1255 = vunpack.c.l.b16 %v1220
    %v1256 = vunpack.c.h.b16 %v1220
    %v1257 = vunpack.c.l.b16 %v1221
    %v1258 = vunpack.c.h.b16 %v1221
    %v1259 = vunpack.c.l.b16 %v1222
    %v1260 = vunpack.c.h.b16 %v1222
    %v1261 = vunpack.c.l.b16 %v1223
    %v1262 = vunpack.c.h.b16 %v1223
    %v1263 = vunpack.c.l.b16 %v1224
    %v1264 = vunpack.c.h.b16 %v1224
    %v1265 = vunpack.c.l.b16 %v1225
    %v1266 = vunpack.c.h.b16 %v1225
    %v1267 = vunpack.c.l.b16 %v1226
    %v1268 = vunpack.c.h.b16 %v1226
    %v1269 = vunpack.c.l.b16 %v1227
    %v1270 = vunpack.c.h.b16 %v1227
    %v1271 = vunpack.c.l.b16 %v1228
    %v1272 = vunpack.c.h.b16 %v1228
    %v1273 = vunpack.c.l.b16 %v1229
    %v1274 = vunpack.c.h.b16 %v1229
    %v1275 = vunpack.c.l.b16 %v1230
    %v1276 = vunpack.c.h.b16 %v1230
    %v1277 = vunpack.c.l.b16 %v1231
    %v1278 = vunpack.c.h.b16 %v1231
    %v1279 = vunpack.c.l.b16 %v1232
    %v1280 = vunpack.c.h.b16 %v1232
    %v1281 = vpack.c.b16 %v1249, %v1249
    %v1282 = vpack.c.b16 %v1250, %v1250
    %v1283 = vpack.c.b16 %v1251, %v1251
    %v1284 = vpack.c.b16 %v1252, %v1252
    %v1285 = vpack.c.b16 %v1253, %v1253
    %v1286 = vpack.c.b16 %v1254, %v1254
    %v1287 = vpack.c.b16 %v1255, %v1255
    %v1288 = vpack.c.b16 %v1256, %v1256
    %v1289 = vpack.c.b16 %v1257, %v1257
    %v1290 = vpack.c.b16 %v1258, %v1258
    %v1291 = vpack.c.b16 %v1259, %v1259
    %v1292 = vpack.c.b16 %v1260, %v1260
    %v1293 = vpack.c.b16 %v1261, %v1261
    %v1294 = vpack.c.b16 %v1262, %v1262
    %v1295 = vpack.c.b16 %v1263, %v1263
    %v1296 = vpack.c.b16 %v1264, %v1264
    %v1297 = vpack.c.b16 %v1265, %v1265
    %v1298 = vpack.c.b16 %v1266, %v1266
    %v1299 = vpack.c.b16 %v1267, %v1267
    %v1300 = vpack.c.b16 %v1268, %v1268
    %v1301 = vpack.c.b16 %v1269, %v1269
    %v1302 = vpack.c.b16 %v1270, %v1270
    %v1303 = vpack.c.b16 %v1271, %v1271
    %v1304 = vpack.c.b16 %v1272, %v1272
    %v1305 = vpack.c.b16 %v1273, %v1273
    %v1306 = vpack.c.b16 %v1274, %v1274
    %v1307 = vpack.c.b16 %v1275, %v1275
    %v1308 = vpack.c.b16 %v1276, %v1276
    %v1309 = vpack.c.b16 %v1277, %v1277
    %v1310 = vpack.c.b16 %v1278, %v1278
    %v1311 = vpack.c.b16 %v1279, %v1279
    %v1312 = vpack.c.b16 %v1280, %v1280
    %1345 = vst [vmem:[#allocation2] sm:$0xf] %v1281
    %1346 = vst [vmem:[#allocation2 + $0x4] sm:$0xf] %v1282
    %1347 = vst [vmem:[#allocation2 + $0x8] sm:$0xf] %v1283
    %1348 = vst [vmem:[#allocation2 + $0xc] sm:$0xf] %v1284
    %1349 = vst [vmem:[#allocation2 + $0x10] sm:$0xf] %v1285
    %1350 = vst [vmem:[#allocation2 + $0x14] sm:$0xf] %v1286
    %1351 = vst [vmem:[#allocation2 + $0x18] sm:$0xf] %v1287
    %1352 = vst [vmem:[#allocation2 + $0x1c] sm:$0xf] %v1288
    %1353 = vst [vmem:[#allocation2 + $0x20] sm:$0xf] %v1289
    %1354 = vst [vmem:[#allocation2 + $0x24] sm:$0xf] %v1290
    %1355 = vst [vmem:[#allocation2 + $0x28] sm:$0xf] %v1291
    %1356 = vst [vmem:[#allocation2 + $0x2c] sm:$0xf] %v1292
    %1357 = vst [vmem:[#allocation2 + $0x30] sm:$0xf] %v1293
    %1358 = vst [vmem:[#allocation2 + $0x34] sm:$0xf] %v1294
    %1359 = vst [vmem:[#allocation2 + $0x38] sm:$0xf] %v1295
    %1360 = vst [vmem:[#allocation2 + $0x3c] sm:$0xf] %v1296
    %1361 = vst [vmem:[#allocation2 + $0x40] sm:$0xf] %v1297
    %1362 = vst [vmem:[#allocation2 + $0x44] sm:$0xf] %v1298
    %1363 = vst [vmem:[#allocation2 + $0x48] sm:$0xf] %v1299
    %1364 = vst [vmem:[#allocation2 + $0x4c] sm:$0xf] %v1300
    %1365 = vst [vmem:[#allocation2 + $0x50] sm:$0xf] %v1301
    %1366 = vst [vmem:[#allocation2 + $0x54] sm:$0xf] %v1302
    %1367 = vst [vmem:[#allocation2 + $0x58] sm:$0xf] %v1303
    %1368 = vst [vmem:[#allocation2 + $0x5c] sm:$0xf] %v1304
    %1369 = vst [vmem:[#allocation2 + $0x60] sm:$0xf] %v1305
    %1370 = vst [vmem:[#allocation2 + $0x64] sm:$0xf] %v1306
    %1371 = vst [vmem:[#allocation2 + $0x68] sm:$0xf] %v1307
    %1372 = vst [vmem:[#allocation2 + $0x6c] sm:$0xf] %v1308
    %1373 = vst [vmem:[#allocation2 + $0x70] sm:$0xf] %v1309
    %1374 = vst [vmem:[#allocation2 + $0x74] sm:$0xf] %v1310
    %1375 = vst [vmem:[#allocation2 + $0x78] sm:$0xf] %v1311
    %1376 = vst [vmem:[#allocation2 + $0x7c] sm:$0xf] %v1312
    // Predicated region
    $region30: #{tpu_custom_call.1} parent=1 // pred_check
      _
    $region31: #{tpu_custom_call.1} parent=1 // pred_check_branch
      %1378 = sbr.rel (0) target = $region33
    $region32: #{tpu_custom_call.1} parent=1 // pred_region
      %s1380 = ssub.s32 2048, 2048
      %1381 = vsyncadd [#allocation3], %s1380
      %s1382 = sshll.u32 [#allocation2], 4
      %s1383 = int_to_ptr.vmem [resolvable:$true] %s1382
      %1388 = dma.vmem_to_hbm [thread:$0]  %s1383, 2048, %s7, [#allocation3], 64, 64, 4
    $region33: #{tpu_custom_call.1} parent=1 // pred_fallthru
      _
    // Predicated region
    $region34: #{tpu_custom_call.1} parent=1 // pred_check
      _
    $region35: #{tpu_custom_call.1} parent=1 // pred_check_branch
      %1390 = sbr.rel (0) target = $region37
    $region36: #{tpu_custom_call.1} parent=1 // pred_region
      %1391 = dma.done [#allocation3], 2048
    $region37: #{tpu_custom_call.1} parent=1 // pred_fallthru
      _
    %1392 = vsyncpa [#allocation3], 1

</llo_original>
